<compile_context>
chip_gen: v6e
topology: v6e:2x2x1
jax: 0.10.0
libtpu: 0.0.40
codegen_flags: <defaults>
</compile_context>

<pallas_src>
import functools

import jax
import jax.numpy as jnp
from jax.experimental import pallas as pl
from jax.experimental.pallas import tpu as pltpu

LANE = 128
SUBLANE = 8


def _round_up(x, m):
    return ((x + m - 1) // m) * m


# ----------------------------------------------------------------------------
# Fused Pallas kernel: relation_encoder MLP + placement_decoder Linear
# ----------------------------------------------------------------------------
def _pgnn_fused_kernel(rel_x_ref, rw1_ref, rb1_ref, rw2_ref, rb2_ref,
                       dec_x_ref, dw_ref, db_ref,
                       rel_o_ref, dec_o_ref):
    # relation_encoder: Linear(word, 2*embd) -> LeakyReLU(0.01) -> Linear(2*embd, embd)
    # rel_x / weights arrive as bf16 (MXU native); accumulate in f32.
    h = jnp.dot(rel_x_ref[...], rw1_ref[...],
                preferred_element_type=jnp.float32)
    h = h + rb1_ref[...]                              # f32 bias add (128 lanes, zero-padded)
    h = jnp.where(h > 0, h, 0.01 * h)                 # LeakyReLU in f32 (v5e-safe)
    y = jnp.dot(h.astype(jnp.bfloat16), rw2_ref[...],
                preferred_element_type=jnp.float32)   # full-K (128) MXU pass
    rel_o_ref[...] = (y + rb2_ref[...]).astype(rel_o_ref.dtype)

    # placement_decoder: Linear(embd, output_dim)
    z = jnp.dot(dec_x_ref[...], dw_ref[...],
                preferred_element_type=jnp.float32)
    dec_o_ref[...] = (z + db_ref[...]).astype(dec_o_ref.dtype)


def pgnn_fused_call(rel_x, rw1, rb1, rw2, rb2, dec_x, dw, db):
    """Single gridless pallas_call: relation-encoder MLP + placement decoder."""
    n_rel = rel_x.shape[0]
    n_dec = dec_x.shape[0]
    rel_out = rw2.shape[1]   # embd_dim
    dec_out = dw.shape[1]    # output_dim

    # Sublane-align row counts only if needed (no-op at the shapes used here;
    # full-array blocks would lower anyway, this just keeps tiles dense).
    n_rel_p = _round_up(n_rel, SUBLANE)
    n_dec_p = _round_up(n_dec, SUBLANE)
    if n_rel_p != n_rel:
        rel_x = jnp.pad(rel_x, ((0, n_rel_p - n_rel), (0, 0)))
    if n_dec_p != n_dec:
        dec_x = jnp.pad(dec_x, ((0, n_dec_p - n_dec), (0, 0)))

    vmem = pl.BlockSpec(memory_space=pltpu.MemorySpace.VMEM)
    rel_o, dec_o = pl.pallas_call(
        _pgnn_fused_kernel,
        out_shape=(
            jax.ShapeDtypeStruct((n_rel_p, rel_out), jnp.float32),
            jax.ShapeDtypeStruct((n_dec_p, dec_out), jnp.float32),
        ),
        # No grid: whole arrays live in VMEM for the single invocation.
        in_specs=[vmem] * 8,
        out_specs=(vmem, vmem),
    )(rel_x, rw1, rb1, rw2, rb2, dec_x, dw, db)

    if n_rel_p != n_rel:
        rel_o = rel_o[:n_rel]
    if n_dec_p != n_dec:
        dec_o = dec_o[:n_dec]
    return rel_o, dec_o


# ----------------------------------------------------------------------------
# Parameter init (deterministic, matches nn.Linear default init style)
# ----------------------------------------------------------------------------
def _linear_params(key, fan_in, fan_out, *, pad_in_to=None, pad_out_to=None):
    kw, kb = jax.random.split(key)
    bound = 1.0 / (fan_in ** 0.5)
    w = jax.random.uniform(kw, (fan_in, fan_out), jnp.float32, -bound, bound)
    b = jax.random.uniform(kb, (1, fan_out), jnp.float32, -bound, bound)
    if pad_out_to is not None and pad_out_to > fan_out:
        w = jnp.pad(w, ((0, 0), (0, pad_out_to - fan_out)))
        b = jnp.pad(b, ((0, 0), (0, pad_out_to - fan_out)))
    if pad_in_to is not None and pad_in_to > fan_in:
        w = jnp.pad(w, ((0, pad_in_to - fan_in), (0, 0)))
    # bf16 weights feed the MXU natively and halve HBM->VMEM bytes;
    # biases stay f32 (added to the f32 accumulator).
    return w.astype(jnp.bfloat16), b


def build_params(key, embd_dim, output_dim, word_embd_dim):
    """Mirrors PGNN_Base.__build_model (the layers defined in the base class)."""
    ks = jax.random.split(key, 6)
    hid = 2 * embd_dim
    params = {}
    # self.init_obs = nn.Linear(embd_dim, 2*embd_dim)   (not used in base forward)
    params["init_obs"] = _linear_params(ks[0], embd_dim, hid)
    # self.placement_decoder = nn.Linear(embd_dim, output_dim)
    params["placement_decoder"] = _linear_params(ks[1], embd_dim, output_dim)
    # self.relation_encoder = Seq(Linear(word, hid), LeakyReLU, Linear(hid, embd))
    # Hidden dim zero-padded to 128 lanes (w1 cols / b1 / w2 rows).
    params["rel_enc_1"] = _linear_params(ks[2], word_embd_dim, hid, pad_out_to=LANE)
    params["rel_enc_2"] = _linear_params(ks[3], hid, embd_dim, pad_in_to=LANE)
    # self.reverse_relation_encoder = same structure (not used in base forward)
    params["rev_rel_enc_1"] = _linear_params(ks[4], word_embd_dim, hid, pad_out_to=LANE)
    params["rev_rel_enc_2"] = _linear_params(ks[5], hid, embd_dim, pad_in_to=LANE)
    # TODO(synk): Gaussian_model(embd_dim) is not defined in the provided module.
    return params


# ----------------------------------------------------------------------------
# Forward (PGNN_Base.forward, restricted to what the base class defines)
# ----------------------------------------------------------------------------
def pgnn_base_forward(params, rel_lang_embd, *, particle_num, embd_dim,
                      output_dim, nl, seed=0):
    bs = rel_lang_embd.shape[0]

    # TODO(synk): `resampling`, `self.obs_encoder` (conv encoder over 160x160
    # observations) and `self.model` (particle message-passing GNN) are not
    # defined in PGNN_Base, so that portion of the forward has no
    # implementable body here.

    # h_init = self.__init_hidden_features(bs, nl)
    kv = jax.random.PRNGKey(seed + 1)
    h_v = 0.2 * jax.random.normal(kv, (bs, nl, particle_num, embd_dim), jnp.float32)
    h_w = jnp.log(jnp.ones((bs, nl, particle_num, 1), jnp.float32) / particle_num)

    rw1, rb1 = params["rel_enc_1"]
    rw2, rb2 = params["rel_enc_2"]
    dw, db = params["placement_decoder"]

    # Pre-cast activations to bf16 (fuses with the reshapes under jit).
    rel_x = rel_lang_embd.reshape(bs * 4, -1).astype(jnp.bfloat16)
    # `self.model` is undefined in the base class; the decoder is applied to
    # the last layer of the initialized hidden features in its place.
    dec_x = h_v[:, -1].reshape(bs * particle_num, embd_dim).astype(jnp.bfloat16)

    # Single fused launch:
    #   rel   = self.relation_encoder(rel_lang_embd)
    #   p_out = self.placement_decoder(h_last)
    rel, p_out = pgnn_fused_call(rel_x, rw1, rb1, rw2, rb2, dec_x, dw, db)

    # rel_embd = relation_encoder(rel_lang_embd).repeat_interleave(2, dim=1)
    # (broadcast + reshape; fused into one small XLA op under jit)
    rel_embd = jnp.broadcast_to(
        rel.reshape(bs, 4, 1, embd_dim), (bs, 4, 2, embd_dim)
    ).reshape(bs, 8, embd_dim)
    p_out = p_out.reshape(bs, particle_num, output_dim)

    # e_idx / o_idx graph bookkeeping (constants under jit)
    e_idx = jnp.array(
        [list(range(nl - 1)) + [nl - 1] * (nl - 1),
         [nl - 1] * (nl - 1) + list(range(nl - 1))], dtype=jnp.int32)
    o_idx = jnp.arange(nl - 1, dtype=jnp.int32)

    return p_out, rel_embd, (h_v, h_w), e_idx, o_idx


# ----------------------------------------------------------------------------
if __name__ == "__main__":
    # Small, module-consistent shapes.
    bs = 2
    particle_num = 8
    embd_dim = 32
    output_dim = 8
    word_embd_dim = 128
    nl = 4  # number of graph nodes / observation layers

    key = jax.random.PRNGKey(0)
    k_param, k_in = jax.random.split(key)

    params = build_params(k_param, embd_dim, output_dim, word_embd_dim)
    # rel_lang_embd: [bs, 4, word_embd_dim]
    rel_lang_embd = jax.random.normal(k_in, (bs, 4, word_embd_dim), jnp.float32)

    fwd = jax.jit(functools.partial(
        pgnn_base_forward,
        particle_num=particle_num,
        embd_dim=embd_dim,
        output_dim=output_dim,
        nl=nl,
    ))
    p_out, rel_embd, (h_v, h_w), e_idx, o_idx = fwd(params, rel_lang_embd)
    jax.block_until_ready((p_out, rel_embd, h_v, h_w, e_idx, o_idx))

    assert p_out.shape == (bs, particle_num, output_dim)
    assert rel_embd.shape == (bs, 8, embd_dim)
    assert h_v.shape == (bs, nl, particle_num, embd_dim)
    assert h_w.shape == (bs, nl, particle_num, 1)
    print("KERNEL_OK")
</pallas_src>

<mosaic_0001>
module attributes {stable_mosaic.version = 11 : i64} {
  func.func @_pgnn_fused_kernel(%arg0: memref<8x128xbf16, #tpu.memory_space<vmem>>, %arg1: memref<128x128xbf16, #tpu.memory_space<vmem>>, %arg2: memref<1x128xf32, #tpu.memory_space<vmem>>, %arg3: memref<128x32xbf16, #tpu.memory_space<vmem>>, %arg4: memref<1x32xf32, #tpu.memory_space<vmem>>, %arg5: memref<16x32xbf16, #tpu.memory_space<vmem>>, %arg6: memref<32x8xbf16, #tpu.memory_space<vmem>>, %arg7: memref<1x8xf32, #tpu.memory_space<vmem>>, %arg8: memref<8x32xf32, #tpu.memory_space<vmem>>, %arg9: memref<16x8xf32, #tpu.memory_space<vmem>>) attributes {dimension_semantics = [], scalar_prefetch = 0 : i64, scratch_operands = 0 : i64, tpu.core_type = #tpu.core_type<tc>} {
    %c0 = arith.constant 0 : index
    %c0_0 = arith.constant 0 : index
    %0 = vector.load %arg0[%c0, %c0_0] : memref<8x128xbf16, #tpu.memory_space<vmem>>, vector<8x128xbf16>
    %c0_1 = arith.constant 0 : index
    %c0_2 = arith.constant 0 : index
    %1 = vector.load %arg1[%c0_1, %c0_2] : memref<128x128xbf16, #tpu.memory_space<vmem>>, vector<128x128xbf16>
    %cst = arith.constant dense<0.000000e+00> : vector<8x128xf32>
    %2 = tpu.matmul %0, %1, %cst {dimension_numbers = #tpu.dot_dimension_numbers<[1], [0], [0], [1], [0, 0, 1, 1], [], []>} : vector<8x128xbf16>, vector<128x128xbf16>, vector<8x128xf32> -> vector<8x128xf32>
    %c0_3 = arith.constant 0 : index
    %c0_4 = arith.constant 0 : index
    %3 = vector.load %arg2[%c0_3, %c0_4] : memref<1x128xf32, #tpu.memory_space<vmem>>, vector<1x128xf32>
    %4 = vector.broadcast %3 : vector<1x128xf32> to vector<8x128xf32>
    %5 = arith.addf %2, %4 : vector<8x128xf32>
    %cst_5 = arith.constant 0.000000e+00 : f32
    %6 = vector.broadcast %cst_5 : f32 to vector<8x128xf32>
    %7 = arith.cmpf ogt, %5, %6 : vector<8x128xf32>
    %cst_6 = arith.constant 0.00999999977 : f32
    %8 = vector.broadcast %cst_6 : f32 to vector<8x128xf32>
    %9 = arith.mulf %8, %5 : vector<8x128xf32>
    %10 = arith.select %7, %5, %9 : vector<8x128xi1>, vector<8x128xf32>
    %11 = arith.truncf %10 : vector<8x128xf32> to vector<8x128xbf16>
    %c0_7 = arith.constant 0 : index
    %c0_8 = arith.constant 0 : index
    %12 = vector.load %arg3[%c0_7, %c0_8] : memref<128x32xbf16, #tpu.memory_space<vmem>>, vector<128x32xbf16>
    %cst_9 = arith.constant dense<0.000000e+00> : vector<8x32xf32>
    %13 = tpu.matmul %11, %12, %cst_9 {dimension_numbers = #tpu.dot_dimension_numbers<[1], [0], [0], [1], [0, 0, 1, 1], [], []>} : vector<8x128xbf16>, vector<128x32xbf16>, vector<8x32xf32> -> vector<8x32xf32>
    %c0_10 = arith.constant 0 : index
    %c0_11 = arith.constant 0 : index
    %14 = vector.load %arg4[%c0_10, %c0_11] : memref<1x32xf32, #tpu.memory_space<vmem>>, vector<1x32xf32>
    %15 = vector.broadcast %14 : vector<1x32xf32> to vector<8x32xf32>
    %16 = arith.addf %13, %15 : vector<8x32xf32>
    %c0_12 = arith.constant 0 : index
    %c0_13 = arith.constant 0 : index
    %17 = vector.load %arg8[%c0_12, %c0_13] : memref<8x32xf32, #tpu.memory_space<vmem>>, vector<8x32xf32>
    tpu.vector_store %arg8[%c0_12, %c0_13], %16 {strides = array<i32>} : memref<8x32xf32, #tpu.memory_space<vmem>>, vector<8x32xf32>,
    %c0_14 = arith.constant 0 : index
    %c0_15 = arith.constant 0 : index
    %18 = vector.load %arg5[%c0_14, %c0_15] : memref<16x32xbf16, #tpu.memory_space<vmem>>, vector<16x32xbf16>
    %c0_16 = arith.constant 0 : index
    %c0_17 = arith.constant 0 : index
    %19 = vector.load %arg6[%c0_16, %c0_17] : memref<32x8xbf16, #tpu.memory_space<vmem>>, vector<32x8xbf16>
    %cst_18 = arith.constant dense<0.000000e+00> : vector<16x8xf32>
    %20 = tpu.matmul %18, %19, %cst_18 {dimension_numbers = #tpu.dot_dimension_numbers<[1], [0], [0], [1], [0, 0, 1, 1], [], []>} : vector<16x32xbf16>, vector<32x8xbf16>, vector<16x8xf32> -> vector<16x8xf32>
    %c0_19 = arith.constant 0 : index
    %c0_20 = arith.constant 0 : index
    %21 = vector.load %arg7[%c0_19, %c0_20] : memref<1x8xf32, #tpu.memory_space<vmem>>, vector<1x8xf32>
    %22 = vector.broadcast %21 : vector<1x8xf32> to vector<16x8xf32>
    %23 = arith.addf %20, %22 : vector<16x8xf32>
    %c0_21 = arith.constant 0 : index
    %c0_22 = arith.constant 0 : index
    %24 = vector.load %arg9[%c0_21, %c0_22] : memref<16x8xf32, #tpu.memory_space<vmem>>, vector<16x8xf32>
    tpu.vector_store %arg9[%c0_21, %c0_22], %23 {strides = array<i32>} : memref<16x8xf32, #tpu.memory_space<vmem>>, vector<16x8xf32>,
    return
  }
}

</mosaic_0001>

<llo_original>
// kernel: pgnn_base_forward.1
$region0: #{pgnn_base_forward.1}
  #allocation0 [shape = 'u32[]', space=smem, size = 0x4, offset = 0x4, fixed_abs, tag = 'smem constant byte address 0x4 - core index']
  #allocation1 [shape = 'u32[144,128]{1,0:T(1,128)}', space=vmem, size = 0x12000, scoped, tag = 'internal scratch']
  %s0 = inlined_call_operand.vmem [shape: bf16[8,128], index: 0, kind: input, shape index: {}]
  %s1 = inlined_call_operand.vmem [shape: bf16[128,128], index: 1, kind: input, shape index: {}]
  %s2 = inlined_call_operand.vmem [shape: f32[1,128], index: 2, kind: input, shape index: {}]
  %s3 = inlined_call_operand.vmem [shape: bf16[128,32], index: 3, kind: input, shape index: {}]
  %s4 = inlined_call_operand.vmem [shape: f32[1,32], index: 4, kind: input, shape index: {}]
  %s5 = inlined_call_operand.vmem [shape: bf16[16,32], index: 5, kind: input, shape index: {}]
  %s6 = inlined_call_operand.vmem [shape: bf16[32,8], index: 6, kind: input, shape index: {}]
  %s7 = inlined_call_operand.vmem [shape: f32[1,8], index: 7, kind: input, shape index: {}]
  %s8 = inlined_call_operand.vmem [shape: f32[8,32], index: 8, kind: output, shape index: {0}]
  %s9 = inlined_call_operand.hbm [shape: f32[16,8], index: 9, kind: output, shape index: {1}]
  %10 = xla_tuple %s8, %s9
  %s11 = sld [smem:[#allocation0]]
  $region50: #{pgnn_base_forward.1} parent=0
    _
  %s13 = ssub.s32 1, %s11
  %s14 = scalar_select 0, %s13, %s11
  $region1: #{pgnn_base_forward.1} parent=0
    #allocation2 [shape = 'u8[8192]{0}', space=vmem, size = 0x2000, scoped, tag = 'output window, operand 1, single buffered']
    #allocation3 [shape = 's32[1]{0}', space=sflag, size = 0x4, scoped, tag = 'scoped memory for pgnn_base_forward.1']
    %15 = vsyncpa [#allocation3], 0
    // Predicated region
    $region2: #{pgnn_base_forward.1} parent=1 // pred_check
      _
    $region3: #{pgnn_base_forward.1} parent=1 // pred_check_branch
      %17 = sbr.rel (0) target = $region5
    $region4: #{pgnn_base_forward.1} parent=1 // pred_region
      _
    $region5: #{pgnn_base_forward.1} parent=1 // pred_fallthru
      _
    // Predicated region
    $region6: #{pgnn_base_forward.1} parent=1 // pred_check
      _
    $region7: #{pgnn_base_forward.1} parent=1 // pred_check_branch
      %19 = sbr.rel (0) target = $region9
    $region8: #{pgnn_base_forward.1} parent=1 // pred_region
      _
    $region9: #{pgnn_base_forward.1} parent=1 // pred_fallthru
      _
    // Predicated region
    $region10: #{pgnn_base_forward.1} parent=1 // pred_check
      _
    $region11: #{pgnn_base_forward.1} parent=1 // pred_check_branch
      %21 = sbr.rel (0) target = $region13
    $region12: #{pgnn_base_forward.1} parent=1 // pred_region
      _
    $region13: #{pgnn_base_forward.1} parent=1 // pred_fallthru
      _
    // Predicated region
    $region14: #{pgnn_base_forward.1} parent=1 // pred_check
      _
    $region15: #{pgnn_base_forward.1} parent=1 // pred_check_branch
      %23 = sbr.rel (0) target = $region17
    $region16: #{pgnn_base_forward.1} parent=1 // pred_region
      _
    $region17: #{pgnn_base_forward.1} parent=1 // pred_fallthru
      _
    // Predicated region
    $region18: #{pgnn_base_forward.1} parent=1 // pred_check
      _
    $region19: #{pgnn_base_forward.1} parent=1 // pred_check_branch
      %25 = sbr.rel (0) target = $region21
    $region20: #{pgnn_base_forward.1} parent=1 // pred_region
      _
    $region21: #{pgnn_base_forward.1} parent=1 // pred_fallthru
      _
    // Predicated region
    $region22: #{pgnn_base_forward.1} parent=1 // pred_check
      _
    $region23: #{pgnn_base_forward.1} parent=1 // pred_check_branch
      %27 = sbr.rel (0) target = $region25
    $region24: #{pgnn_base_forward.1} parent=1 // pred_region
      _
    $region25: #{pgnn_base_forward.1} parent=1 // pred_fallthru
      _
    // Predicated region
    $region26: #{pgnn_base_forward.1} parent=1 // pred_check
      _
    $region27: #{pgnn_base_forward.1} parent=1 // pred_check_branch
      %29 = sbr.rel (0) target = $region29
    $region28: #{pgnn_base_forward.1} parent=1 // pred_region
      _
    $region29: #{pgnn_base_forward.1} parent=1 // pred_fallthru
      _
    // Predicated region
    $region30: #{pgnn_base_forward.1} parent=1 // pred_check
      _
    $region31: #{pgnn_base_forward.1} parent=1 // pred_check_branch
      %31 = sbr.rel (0) target = $region33
    $region32: #{pgnn_base_forward.1} parent=1 // pred_region
      _
    $region33: #{pgnn_base_forward.1} parent=1 // pred_fallthru
      _
    %v33 = vld [vmem:[%s0] sm:$0xf]
    %v34 = vld [vmem:[%s1] sm:$0xf]
    %v35 = vld [vmem:[%s1 + $0x4] sm:$0xf]
    %v36 = vld [vmem:[%s1 + $0x8] sm:$0xf]
    %v37 = vld [vmem:[%s1 + $0xc] sm:$0xf]
    %v38 = vld [vmem:[%s1 + $0x10] sm:$0xf]
    %v39 = vld [vmem:[%s1 + $0x14] sm:$0xf]
    %v40 = vld [vmem:[%s1 + $0x18] sm:$0xf]
    %v41 = vld [vmem:[%s1 + $0x1c] sm:$0xf]
    %v42 = vld [vmem:[%s1 + $0x20] sm:$0xf]
    %v43 = vld [vmem:[%s1 + $0x24] sm:$0xf]
    %v44 = vld [vmem:[%s1 + $0x28] sm:$0xf]
    %v45 = vld [vmem:[%s1 + $0x2c] sm:$0xf]
    %v46 = vld [vmem:[%s1 + $0x30] sm:$0xf]
    %v47 = vld [vmem:[%s1 + $0x34] sm:$0xf]
    %v48 = vld [vmem:[%s1 + $0x38] sm:$0xf]
    %v49 = vld [vmem:[%s1 + $0x3c] sm:$0xf]
    %v50 = vld [vmem:[%s2] sm:$0x1]
    %v52 = vlaneseq
    %v53 = vshrl.u32 %v52, 7
    %v54 = vsub.s32 0, %v53
    %v55 = vrot.slane %v50, %v54
    %v73 = vunpack.c.l.b16 %v34
    %v74 = vunpack.c.l.b16 %v35
    %v75 = vunpack.c.l.b16 %v36
    %v76 = vunpack.c.l.b16 %v37
    %v77 = vunpack.c.l.b16 %v38
    %v78 = vunpack.c.l.b16 %v39
    %v79 = vunpack.c.l.b16 %v40
    %v80 = vunpack.c.l.b16 %v41
    %v81 = vunpack.c.l.b16 %v42
    %v82 = vunpack.c.l.b16 %v43
    %v83 = vunpack.c.l.b16 %v44
    %v84 = vunpack.c.l.b16 %v45
    %v85 = vunpack.c.l.b16 %v46
    %v86 = vunpack.c.l.b16 %v47
    %v87 = vunpack.c.l.b16 %v48
    %v88 = vunpack.c.l.b16 %v49
    %v89 = vpack.c.b16 %v74, %v73
    %v90 = vpack.c.b16 %v76, %v75
    %v91 = vpack.c.b16 %v78, %v77
    %v92 = vpack.c.b16 %v80, %v79
    %v93 = vpack.c.b16 %v82, %v81
    %v94 = vpack.c.b16 %v84, %v83
    %v95 = vpack.c.b16 %v86, %v85
    %v96 = vpack.c.b16 %v88, %v87
    %105 = vmatprep.subr.bf16.mxu0 0
    %106 = vmatpush1.bf16.msra.mxu0 %v96
    %107 = vmatprep.subr.bf16.mxu0 0
    %108 = vmatpush1.bf16.msra.mxu0 %v95
    %109 = vmatprep.subr.bf16.mxu0 0
    %110 = vmatpush1.bf16.msra.mxu0 %v94
    %111 = vmatprep.subr.bf16.mxu0 0
    %112 = vmatpush1.bf16.msra.mxu0 %v93
    %113 = vmatprep.subr.bf16.mxu0 0
    %114 = vmatpush1.bf16.msra.mxu0 %v92
    %115 = vmatprep.subr.bf16.mxu0 0
    %116 = vmatpush1.bf16.msra.mxu0 %v91
    %117 = vmatprep.subr.bf16.mxu0 0
    %118 = vmatpush1.bf16.msra.mxu0 %v90
    %119 = vmatprep.subr.bf16.mxu0 0
    %120 = vmatpush1.bf16.msra.mxu0 %v89
    %121 = vmatprep.subr.bf16.mxu0 0
    %122 = vmatpush2.bf16.msra.mxu0 0
    %123 = vmatprep.subr.bf16.mxu0 0
    %124 = vmatpush2.bf16.msra.mxu0 0
    %125 = vmatprep.subr.bf16.mxu0 0
    %126 = vmatpush2.bf16.msra.mxu0 0
    %127 = vmatprep.subr.bf16.mxu0 0
    %128 = vmatpush2.bf16.msra.mxu0 0
    %129 = vmatprep.subr.bf16.mxu0 0
    %130 = vmatpush2.bf16.msra.mxu0 0
    %131 = vmatprep.subr.bf16.mxu0 0
    %132 = vmatpush2.bf16.msra.mxu0 0
    %133 = vmatprep.subr.bf16.mxu0 0
    %134 = vmatpush2.bf16.msra.mxu0 0
    %135 = vmatprep.subr.bf16.mxu0 0
    %136 = vmatpush2.bf16.msra.mxu0 0
    %137 = vmatprep.mubr.bf16.mxu0 0
    %138 = vmatmul.mubr.bf16.gmra.mxu0 %v33
    %v139 = vpop.f32.mrf.mxu0
    %v140 = vadd.f32 %v55, %v139
    %v141 = vpop.f32.mrf.mxu0
    %v142 = vpop.f32.mrf.mxu0
    %v143 = vpop.f32.mrf.mxu0
    %144 = vdwg.mxu0
    %vm145 = vcmp.gt.f32.partialorder %v140, 0.0
    %v146 = vmul.f32 %v140, 0.01
    %v147 = vsel %vm145, %v140, %v146
    %v148 = vpack.c.bf16 %v147, %v147
    %v149 = vld [vmem:[%s3] sm:$0xf]
    %v150 = vld [vmem:[%s3 + $0x4] sm:$0xf]
    %v151 = vld [vmem:[%s3 + $0x8] sm:$0xf]
    %v152 = vld [vmem:[%s3 + $0xc] sm:$0xf]
    %v153 = vld [vmem:[%s3 + $0x10] sm:$0xf]
    %v154 = vld [vmem:[%s3 + $0x14] sm:$0xf]
    %v155 = vld [vmem:[%s3 + $0x18] sm:$0xf]
    %v156 = vld [vmem:[%s3 + $0x1c] sm:$0xf]
    %v157 = vld [vmem:[%s3 + $0x20] sm:$0xf]
    %v158 = vld [vmem:[%s3 + $0x24] sm:$0xf]
    %v159 = vld [vmem:[%s3 + $0x28] sm:$0xf]
    %v160 = vld [vmem:[%s3 + $0x2c] sm:$0xf]
    %v161 = vld [vmem:[%s3 + $0x30] sm:$0xf]
    %v162 = vld [vmem:[%s3 + $0x34] sm:$0xf]
    %v163 = vld [vmem:[%s3 + $0x38] sm:$0xf]
    %v164 = vld [vmem:[%s3 + $0x3c] sm:$0xf]
    %v165 = vld [vmem:[%s4] sm:$0x1]
    %v167 = vlaneseq
    %v168 = vshrl.u32 %v167, 7
    %v169 = vsub.s32 0, %v168
    %v170 = vrot.slane %v165, %v169
    %v188 = vunpack.c.l.b16 %v149
    %v189 = vunpack.c.l.b16 %v150
    %v190 = vunpack.c.l.b16 %v151
    %v191 = vunpack.c.l.b16 %v152
    %v192 = vunpack.c.l.b16 %v153
    %v193 = vunpack.c.l.b16 %v154
    %v194 = vunpack.c.l.b16 %v155
    %v195 = vunpack.c.l.b16 %v156
    %v196 = vunpack.c.l.b16 %v157
    %v197 = vunpack.c.l.b16 %v158
    %v198 = vunpack.c.l.b16 %v159
    %v199 = vunpack.c.l.b16 %v160
    %v200 = vunpack.c.l.b16 %v161
    %v201 = vunpack.c.l.b16 %v162
    %v202 = vunpack.c.l.b16 %v163
    %v203 = vunpack.c.l.b16 %v164
    %v204 = vpack.c.b16 %v189, %v188
    %v205 = vpack.c.b16 %v191, %v190
    %v206 = vpack.c.b16 %v193, %v192
    %v207 = vpack.c.b16 %v195, %v194
    %v208 = vpack.c.b16 %v197, %v196
    %v209 = vpack.c.b16 %v199, %v198
    %v210 = vpack.c.b16 %v201, %v200
    %v211 = vpack.c.b16 %v203, %v202
    %220 = vmatprep.subr.bf16.mxu0 0
    %221 = vmatpush1.bf16.msra.mxu0 %v211
    %222 = vmatprep.subr.bf16.mxu0 0
    %223 = vmatpush1.bf16.msra.mxu0 %v210
    %224 = vmatprep.subr.bf16.mxu0 0
    %225 = vmatpush1.bf16.msra.mxu0 %v209
    %226 = vmatprep.subr.bf16.mxu0 0
    %227 = vmatpush1.bf16.msra.mxu0 %v208
    %228 = vmatprep.subr.bf16.mxu0 0
    %229 = vmatpush1.bf16.msra.mxu0 %v207
    %230 = vmatprep.subr.bf16.mxu0 0
    %231 = vmatpush1.bf16.msra.mxu0 %v206
    %232 = vmatprep.subr.bf16.mxu0 0
    %233 = vmatpush1.bf16.msra.mxu0 %v205
    %234 = vmatprep.subr.bf16.mxu0 0
    %235 = vmatpush1.bf16.msra.mxu0 %v204
    %236 = vmatprep.subr.bf16.mxu0 0
    %237 = vmatpush2.bf16.msra.mxu0 0
    %238 = vmatprep.subr.bf16.mxu0 0
    %239 = vmatpush2.bf16.msra.mxu0 0
    %240 = vmatprep.subr.bf16.mxu0 0
    %241 = vmatpush2.bf16.msra.mxu0 0
    %242 = vmatprep.subr.bf16.mxu0 0
    %243 = vmatpush2.bf16.msra.mxu0 0
    %244 = vmatprep.subr.bf16.mxu0 0
    %245 = vmatpush2.bf16.msra.mxu0 0
    %246 = vmatprep.subr.bf16.mxu0 0
    %247 = vmatpush2.bf16.msra.mxu0 0
    %248 = vmatprep.subr.bf16.mxu0 0
    %249 = vmatpush2.bf16.msra.mxu0 0
    %250 = vmatprep.subr.bf16.mxu0 0
    %251 = vmatpush2.bf16.msra.mxu0 0
    %252 = vmatprep.mubr.bf16.mxu0 0
    %253 = vmatmul.mubr.bf16.gmra.mxu0 %v148
    %v254 = vpop.f32.mrf.mxu0
    %v255 = vadd.f32 %v170, %v254
    %v256 = vpop.f32.mrf.mxu0
    %v257 = vpop.f32.mrf.mxu0
    %v258 = vpop.f32.mrf.mxu0
    %259 = vdwg.mxu0
    %vm260 = vcmask 261120
    %261 = vst.msk [vmem:[%s8] sm:$0xff] %vm260, %v255
    %v262 = vld [vmem:[%s5] sm:$0xf]
    %v263 = vld [vmem:[%s5 + $0x4] sm:$0xf]
    %v264 = vld [vmem:[%s6] sm:$0xf]
    %v265 = vld [vmem:[%s6 + $0x4] sm:$0xf]
    %v266 = vld [vmem:[%s6 + $0x8] sm:$0xf]
    %v267 = vld [vmem:[%s6 + $0xc] sm:$0xf]
    %v268 = vld [vmem:[%s7] sm:$0x1]
    %v270 = vlaneseq
    %v271 = vshrl.u32 %v270, 7
    %v272 = vsub.s32 0, %v271
    %v273 = vrot.slane %v268, %v272
    %v277 = vunpack.c.l.b16 %v262
    %v278 = vunpack.c.l.b16 %v263
    %v279 = vpack.c.b16 %v278, %v277
    %v284 = vunpack.c.l.b16 %v264
    %v285 = vunpack.c.l.b16 %v265
    %v286 = vunpack.c.l.b16 %v266
    %v287 = vunpack.c.l.b16 %v267
    %v288 = vpack.c.b16 %v285, %v284
    %v289 = vpack.c.b16 %v287, %v286
    %v293 = vsel %vm260, %v279, 0
    %295 = vmatprep.subr.bf16.mxu0 0
    %296 = vmatpush1.bf16.msra.mxu0 0
    %297 = vmatprep.subr.bf16.mxu0 0
    %298 = vmatpush1.bf16.msra.mxu0 0
    %299 = vmatprep.subr.bf16.mxu0 0
    %300 = vmatpush1.bf16.msra.mxu0 0
    %301 = vmatprep.subr.bf16.mxu0 0
    %302 = vmatpush1.bf16.msra.mxu0 0
    %303 = vmatprep.subr.bf16.mxu0 0
    %304 = vmatpush1.bf16.msra.mxu0 0
    %305 = vmatprep.subr.bf16.mxu0 0
    %306 = vmatpush1.bf16.msra.mxu0 0
    %307 = vmatprep.subr.bf16.mxu0 0
    %308 = vmatpush1.bf16.msra.mxu0 %v289
    %309 = vmatprep.subr.bf16.mxu0 0
    %310 = vmatpush1.bf16.msra.mxu0 %v288
    %311 = vmatprep.subr.bf16.mxu0 0
    %312 = vmatpush2.bf16.msra.mxu0 0
    %313 = vmatprep.subr.bf16.mxu0 0
    %314 = vmatpush2.bf16.msra.mxu0 0
    %315 = vmatprep.subr.bf16.mxu0 0
    %316 = vmatpush2.bf16.msra.mxu0 0
    %317 = vmatprep.subr.bf16.mxu0 0
    %318 = vmatpush2.bf16.msra.mxu0 0
    %319 = vmatprep.subr.bf16.mxu0 0
    %320 = vmatpush2.bf16.msra.mxu0 0
    %321 = vmatprep.subr.bf16.mxu0 0
    %322 = vmatpush2.bf16.msra.mxu0 0
    %323 = vmatprep.subr.bf16.mxu0 0
    %324 = vmatpush2.bf16.msra.mxu0 0
    %325 = vmatprep.subr.bf16.mxu0 0
    %326 = vmatpush2.bf16.msra.mxu0 0
    %327 = vmatprep.mubr.bf16.mxu0 0
    %328 = vmatmul.mubr.bf16.gmra.mxu0 %v293
    %v329 = vpop.f32.mrf.mxu0
    %v330 = vadd.f32 %v273, %v329
    %v331 = vpop.f32.mrf.mxu0
    %v332 = vpop.f32.mrf.mxu0
    %v333 = vadd.f32 %v273, %v332
    %v334 = vpop.f32.mrf.mxu0
    %335 = vdwg.mxu0
    %vm336 = vcmask 64512
    %337 = vst.msk [vmem:[#allocation2] sm:$0xff] %vm336, %v330
    %338 = vst.msk [vmem:[#allocation2 + $0x8] sm:$0xff] %vm336, %v333
    // Predicated region
    $region34: #{pgnn_base_forward.1} parent=1 // pred_check
      _
    $region35: #{pgnn_base_forward.1} parent=1 // pred_check_branch
      %340 = sbr.rel (0) target = $region37
    $region36: #{pgnn_base_forward.1} parent=1 // pred_region
      _
    $region37: #{pgnn_base_forward.1} parent=1 // pred_fallthru
      _
    // Predicated region
    $region38: #{pgnn_base_forward.1} parent=1 // pred_check
      _
    $region39: #{pgnn_base_forward.1} parent=1 // pred_check_branch
      %342 = sbr.rel (0) target = $region41
    $region40: #{pgnn_base_forward.1} parent=1 // pred_region
      %s344 = ssub.s32 256, 256
      %345 = vsyncadd [#allocation3], %s344
      %s346 = sshll.u32 [#allocation2], 4
      %s347 = int_to_ptr.vmem [resolvable:$true] %s346
      %352 = dma.vmem_to_hbm [thread:$0]  %s347, 256, %s9, [#allocation3], 128, 128, 8
    $region41: #{pgnn_base_forward.1} parent=1 // pred_fallthru
      _
    // Predicated region
    $region42: #{pgnn_base_forward.1} parent=1 // pred_check
      _
    $region43: #{pgnn_base_forward.1} parent=1 // pred_check_branch
      %354 = sbr.rel (0) target = $region45
    $region44: #{pgnn_base_forward.1} parent=1 // pred_region
      _
    $region45: #{pgnn_base_forward.1} parent=1 // pred_fallthru
      _
    // Predicated region
    $region46: #{pgnn_base_forward.1} parent=1 // pred_check
      _
    $region47: #{pgnn_base_forward.1} parent=1 // pred_check_branch
      %356 = sbr.rel (0) target = $region49
    $region48: #{pgnn_base_forward.1} parent=1 // pred_region
      %357 = dma.done [#allocation3], 256
    $region49: #{pgnn_base_forward.1} parent=1 // pred_fallthru
      _
    %358 = vsyncpa [#allocation3], 1

</llo_original>
